<compile_context>
chip_gen: v7x
topology: tpu7x:2x2x1
jax: 0.10.0
libtpu: 0.0.40
codegen_flags: <defaults>
</compile_context>

<pallas_src>
import functools
import math

import jax
import jax.numpy as jnp
from jax.experimental import pallas as pl
from jax.experimental.pallas import tpu as pltpu


def _round_up(x, m):
    return ((x + m - 1) // m) * m


@functools.lru_cache(maxsize=None)
def _vmem_limit_bytes():
    """Per-generation scoped-VMEM budget: ~3/4 of physical, capped.

    v5e/v6e (128 MiB physical) -> ~96 MiB; v7x (64 MiB physical) -> ~48 MiB.
    Conservative fallback (48 MiB) if the query is unavailable.
    """
    try:
        cap = int(pltpu.get_tpu_info().vmem_capacity_bytes)
    except Exception:
        cap = 64 * 1024 * 1024
    return max(32 * 1024 * 1024, min((cap * 3) // 4, 100 * 1024 * 1024))


# ----------------------------------------------------------------------------
# Kernel 1: tiled linear layer   y = x @ W + b      (W stored as [Din, Dout])
# ----------------------------------------------------------------------------
def _linear_kernel(x_ref, w_ref, b_ref, o_ref, acc_ref, *, compute_dtype):
    # reduction axis (k) is the last grid axis; accumulator lives in VMEM.
    @pl.when(pl.program_id(2) == 0)
    def _():
        acc_ref[...] = jnp.zeros_like(acc_ref)

    # MXU operands in compute_dtype (bf16 by default -> full MXU rate on
    # v5e/v6e/v7x); accumulation stays f32.
    acc_ref[...] += jnp.dot(x_ref[...].astype(compute_dtype),
                            w_ref[...].astype(compute_dtype),
                            preferred_element_type=jnp.float32)

    @pl.when(pl.program_id(2) == pl.num_programs(2) - 1)
    def _():
        o_ref[...] = (acc_ref[...] + b_ref[...].astype(jnp.float32)
                      ).astype(o_ref.dtype)


def linear(x, w, b, *, tm=512, tn=512, tk=512, compute_dtype=jnp.bfloat16):
    """y = x @ W + b.   x: [N, Din], W: [Din, Dout], b: [Dout].

    * Rows (N) and output columns are never padded in HBM: tiles are clamped
      to the full dim for small problems, and for large problems the partial
      tail tile's out-of-bounds rows/cols are simply discarded on store.
    * The reduction dim must be covered exactly (OOB garbage there would
      pollute every valid row), so tk is chosen as a divisor of Din; K is
      padded only in the rare case where no 128-multiple divisor exists.
    """
    n, din = x.shape
    dout = w.shape[1]

    tm = n if n <= tm else tm            # <=: block equals full dim (no pad)
    tn = dout if dout <= tn else tn

    if din <= tk:
        tk_eff = din
        xk, wk = x, w
    else:
        tk_eff = next((c for c in (tk, 384, 256, 128) if din % c == 0), None)
        if tk_eff is not None:
            xk, wk = x, w
        else:
            kp = _round_up(din, 128)
            tk_eff = next(c for c in (512, 384, 256, 128) if kp % c == 0)
            xk = jnp.pad(x, ((0, 0), (0, kp - din)))
            wk = jnp.pad(w, ((0, kp - din), (0, 0)))
    kdim = xk.shape[1]

    b2 = b.reshape(1, dout)
    grid = (pl.cdiv(n, tm), pl.cdiv(dout, tn), kdim // tk_eff)

    kern = functools.partial(_linear_kernel, compute_dtype=compute_dtype)
    return pl.pallas_call(
        kern,
        out_shape=jax.ShapeDtypeStruct((n, dout), x.dtype),
        grid_spec=pltpu.PrefetchScalarGridSpec(
            num_scalar_prefetch=0,
            grid=grid,
            in_specs=[
                pl.BlockSpec((tm, tk_eff), lambda i, j, k: (i, k)),
                pl.BlockSpec((tk_eff, tn), lambda i, j, k: (k, j)),
                pl.BlockSpec((1, tn), lambda i, j, k: (0, j)),
            ],
            out_specs=pl.BlockSpec((tm, tn), lambda i, j, k: (i, j)),
            scratch_shapes=[pltpu.VMEM((tm, tn), jnp.float32)],
        ),
        compiler_params=pltpu.CompilerParams(
            dimension_semantics=("parallel", "parallel", "arbitrary"),
            vmem_limit_bytes=_vmem_limit_bytes(),
        ),
    )(xk, wk, b2)


# ----------------------------------------------------------------------------
# Kernel 2: flash-style scaled dot product attention.
#   Blocks are lane-dense [1, tile, H*hd]; heads are split in-register.
#   Grid = (batch, q-tiles, kv-tiles); kv axis is the (arbitrary) reduction.
# ----------------------------------------------------------------------------
_NEG_INIT = -1.0e30   # running-max init
_NEG_MASK = -1.0e37   # masked / out-of-bounds score.  Much more negative than
                      # _NEG_INIT so exp(_NEG_MASK - m) underflows to exactly 0
                      # even for a fully-masked kv tile (l/acc stay untouched).


def _flash_sdpa_kernel(q_ref, k_ref, v_ref, o_ref, m_sc, l_sc, acc_sc, *,
                       num_heads, head_dim, scale, kv_len, compute_dtype):
    ki = pl.program_id(2)

    @pl.when(ki == 0)
    def _():
        m_sc[...] = jnp.full(m_sc.shape, _NEG_INIT, dtype=jnp.float32)
        l_sc[...] = jnp.zeros(l_sc.shape, dtype=jnp.float32)
        acc_sc[...] = jnp.zeros(acc_sc.shape, dtype=jnp.float32)

    tq = q_ref.shape[1]
    tkv = k_ref.shape[1]

    # 1/sqrt(hd) folded into q (tq*D mults instead of tq*tkv); MXU operands
    # in compute_dtype (bf16 by default), softmax stats / accumulation in f32.
    q = (q_ref[0].astype(jnp.float32) * scale).astype(compute_dtype)  # (tq, D)
    k = k_ref[0].astype(compute_dtype)                                # (tkv, D)
    v = v_ref[0]                                                      # (tkv, D)

    # kv masking is materialized only when a ragged tail statically exists;
    # aligned shapes pay no iota/compare/select at all.
    ragged = (kv_len % tkv) != 0
    if ragged:
        rem = kv_len % tkv
        limit = jnp.where(ki == pl.num_programs(2) - 1, rem, tkv)     # scalar
        cols_valid = jax.lax.broadcasted_iota(jnp.int32, (tq, tkv), 1) < limit
        rows = jax.lax.broadcasted_iota(jnp.int32, (tkv, 1), 0)
        # zero the OOB value rows once per grid step so stale VMEM (possibly
        # NaN/Inf bit patterns) can never leak through 0 * v.
        v = jnp.where(rows < limit, v, 0.0)
    v = v.astype(compute_dtype)

    # static unroll over heads (num_heads is small); all matmuls are 2-D.
    for h in range(num_heads):
        sl = slice(h * head_dim, (h + 1) * head_dim)
        qh = q[:, sl]                                 # (tq, hd)
        kh = k[:, sl]                                 # (tkv, hd)
        vh = v[:, sl]                                 # (tkv, hd)

        # q . k^T expressed directly (contract last dims) -> no k transpose.
        s = jax.lax.dot_general(qh, kh, (((1,), (1,)), ((), ())),
                                preferred_element_type=jnp.float32)   # (tq, tkv)
        if ragged:
            s = jnp.where(cols_valid, s, _NEG_MASK)

        m_prev = m_sc[h]                              # (tq, 128) lane-replicated
        l_prev = l_sc[h]                              # (tq, 128)
        m_curr = jnp.max(s, axis=-1, keepdims=True)   # (tq, 1)
        m_next = jnp.maximum(m_prev, m_curr)          # (tq, 128)
        alpha = jnp.exp(m_prev - m_next)              # (tq, 128)

        # broadcast the lane-replicated running max across the kv columns.
        if tkv <= 128:
            m_b = m_next[:, :tkv]
        elif tkv % 128 == 0:
            m_b = jnp.tile(m_next, (1, tkv // 128))
        else:
            m_b = m_next[:, :1]
        p = jnp.exp(s - m_b)                          # (tq, tkv) f32

        l_sc[h] = alpha * l_prev + jnp.sum(p, axis=-1, keepdims=True)
        m_sc[h] = m_next

        pv = jnp.dot(p.astype(compute_dtype), vh,
                     preferred_element_type=jnp.float32)              # (tq, hd)
        acc_sc[:, sl] = alpha[:, :1] * acc_sc[:, sl] + pv

    @pl.when(ki == pl.num_programs(2) - 1)
    def _():
        # normalize in place, then one lane-dense store of the whole
        # (tq, H*hd) block -- no per-head concatenate epilogue.
        for h in range(num_heads):
            sl = slice(h * head_dim, (h + 1) * head_dim)
            inv_l = pl.reciprocal(l_sc[h][:, :1], approx=True)   # EUP, ~free
            acc_sc[:, sl] = acc_sc[:, sl] * inv_l
        o_ref[0] = acc_sc[...].astype(o_ref.dtype)


def _pick_kv_tile(D, num_heads, tq, itemsize, budget):
    """Largest kv tile (512/256/128) whose double-buffered working set fits."""
    for tkv in (512, 256, 128):
        need = (2 * 2 * tq * D * itemsize          # q + out blocks, double-buffered
                + 2 * 2 * tkv * D * itemsize       # k + v blocks, double-buffered
                + tq * D * 4                       # f32 accumulator
                + 2 * num_heads * tq * 128 * 4)    # running max / sum
        if need <= (budget * 7) // 10:
            return tkv
    return 128


def sdpa(q, k, v, num_heads, *, tq=128, tkv=None, compute_dtype=jnp.bfloat16):
    """q: [B, Tq, H*hd], k/v: [B, Tk, H*hd] -> [B, Tq, H*hd] (unmasked)."""
    B, Tq, D = q.shape
    Tk = k.shape[1]
    assert D % num_heads == 0
    hd = D // num_heads
    scale = 1.0 / math.sqrt(hd)
    vmem_limit = _vmem_limit_bytes()

    # Tiles never exceed the array dims (small dims use one full-extent block,
    # no HBM padding); large dims use fixed tiles with masked/discarded tails.
    tq = Tq if Tq <= tq else tq
    if tkv is None:
        tkv = _pick_kv_tile(D, num_heads, tq, q.dtype.itemsize, vmem_limit)
    tkv = Tk if Tk <= tkv else tkv

    kern = functools.partial(_flash_sdpa_kernel, num_heads=num_heads,
                             head_dim=hd, scale=scale, kv_len=Tk,
                             compute_dtype=compute_dtype)
    return pl.pallas_call(
        kern,
        out_shape=jax.ShapeDtypeStruct((B, Tq, D), q.dtype),
        grid_spec=pltpu.PrefetchScalarGridSpec(
            num_scalar_prefetch=0,
            grid=(B, pl.cdiv(Tq, tq), pl.cdiv(Tk, tkv)),
            in_specs=[
                pl.BlockSpec((1, tq, D), lambda b, qi, ki: (b, qi, 0)),
                pl.BlockSpec((1, tkv, D), lambda b, qi, ki: (b, ki, 0)),
                pl.BlockSpec((1, tkv, D), lambda b, qi, ki: (b, ki, 0)),
            ],
            out_specs=pl.BlockSpec((1, tq, D), lambda b, qi, ki: (b, qi, 0)),
            scratch_shapes=[
                pltpu.VMEM((num_heads, tq, 128), jnp.float32),  # running max
                pltpu.VMEM((num_heads, tq, 128), jnp.float32),  # running sum
                pltpu.VMEM((tq, D), jnp.float32),               # accumulator
            ],
        ),
        compiler_params=pltpu.CompilerParams(
            dimension_semantics=("parallel", "parallel", "arbitrary"),
            vmem_limit_bytes=vmem_limit,
        ),
    )(q, k, v)


# ----------------------------------------------------------------------------
# Module wrapper (matches MultiHeadAttentionWithCache.forward semantics)
# ----------------------------------------------------------------------------
def init_mha_params(key, dim_q, dim_kv, add_bias=True, dtype=jnp.float32):
    """PyTorch nn.Linear-style init; weights stored transposed as [in, out].

    Fused projection weights (wkv / wqkv) are pre-concatenated ONCE here so
    the forward pass never re-materializes them in HBM per step.
    """
    ks = jax.random.split(key, 8)

    def w(k, din, dout):
        bound = 1.0 / math.sqrt(din)
        return jax.random.uniform(k, (din, dout), dtype, -bound, bound)

    def b(k, din, dout, always=False):
        bound = 1.0 / math.sqrt(din)
        if add_bias or always:
            return jax.random.uniform(k, (dout,), dtype, -bound, bound)
        return jnp.zeros((dout,), dtype)

    p = {
        "wq": w(ks[0], dim_q, dim_q),  "bq": b(ks[1], dim_q, dim_q),
        "wk": w(ks[2], dim_kv, dim_q), "bk": b(ks[3], dim_kv, dim_q),
        "wv": w(ks[4], dim_kv, dim_q), "bv": b(ks[5], dim_kv, dim_q),
        # output_proj always has bias in the PyTorch module
        "wo": w(ks[6], dim_q, dim_q),  "bo": b(ks[7], dim_q, dim_q, always=True),
    }
    # key/value always share the same input tensor -> always fusable
    p["wkv"] = jnp.concatenate([p["wk"], p["wv"]], axis=1)
    p["bkv"] = jnp.concatenate([p["bk"], p["bv"]])
    if dim_q == dim_kv:  # self-attention: q/k/v can share one fused projection
        p["wqkv"] = jnp.concatenate([p["wq"], p["wk"], p["wv"]], axis=1)
        p["bqkv"] = jnp.concatenate([p["bq"], p["bk"], p["bv"]])
    return p


def mha_with_cache_forward(params, num_heads, query, key, value,
                           past_key_value=None, use_cache=False,
                           self_attention=None, kv_shared=None,
                           compute_dtype=jnp.bfloat16):
    """query: [B, Tq, Dq], key/value: [B, Tk, Dkv].  Unmasked attention.

    self_attention / kv_shared select the fused-projection fast paths.  If
    left as None they are inferred by object identity, which never triggers
    under jit tracing -- pass them explicitly in traced code.
    """
    B, Tq, Dq = query.shape
    hd = Dq // num_heads

    if self_attention is None:
        self_attention = (query is key) and (key is value)
    if kv_shared is None:
        kv_shared = key is value

    qf = query.reshape(-1, query.shape[-1])
    kf = key.reshape(-1, key.shape[-1])
    vf = value.reshape(-1, value.shape[-1])

    if self_attention and "wqkv" in params:
        # one HBM pass over the activations, one pallas_call
        qkv = linear(qf, params["wqkv"], params["bqkv"],
                     compute_dtype=compute_dtype)
        q, k, v = qkv[:, :Dq], qkv[:, Dq:2 * Dq], qkv[:, 2 * Dq:]
    elif kv_shared:
        q = linear(qf, params["wq"], params["bq"], compute_dtype=compute_dtype)
        kv = linear(kf, params["wkv"], params["bkv"], compute_dtype=compute_dtype)
        k, v = kv[:, :Dq], kv[:, Dq:]
    else:
        q = linear(qf, params["wq"], params["bq"], compute_dtype=compute_dtype)
        k = linear(kf, params["wk"], params["bk"], compute_dtype=compute_dtype)
        v = linear(vf, params["wv"], params["bv"], compute_dtype=compute_dtype)

    # Activations stay lane-dense [B, T, H*hd]; the head split happens inside
    # the SDPA kernel, so there are no HBM head-transpose round-trips.
    q = q.reshape(B, Tq, Dq)
    k = k.reshape(B, -1, Dq)
    v = v.reshape(B, -1, Dq)

    if past_key_value is not None:
        # past cache arrives in the PyTorch layout [B, H, Tpast, hd]
        pk = past_key_value[0].transpose(0, 2, 1, 3).reshape(B, -1, Dq)
        pv = past_key_value[1].transpose(0, 2, 1, 3).reshape(B, -1, Dq)
        k = jnp.concatenate([pk, k], axis=1)
        v = jnp.concatenate([pv, v], axis=1)

    attn = sdpa(q, k, v, num_heads, compute_dtype=compute_dtype)  # [B, Tq, Dq]
    out = linear(attn.reshape(-1, Dq), params["wo"], params["bo"],
                 compute_dtype=compute_dtype).reshape(B, Tq, Dq)

    if use_cache:
        Tk_tot = k.shape[1]
        ck = k.reshape(B, Tk_tot, num_heads, hd).transpose(0, 2, 1, 3)
        cv = v.reshape(B, Tk_tot, num_heads, hd).transpose(0, 2, 1, 3)
        return out, (ck, cv)
    return out


# ----------------------------------------------------------------------------
# Pure-JAX reference (for sanity check)
# ----------------------------------------------------------------------------
def _ref_forward(params, num_heads, query, key, value):
    B, Tq, Dq = query.shape
    hd = Dq // num_heads
    q = query @ params["wq"] + params["bq"]
    k = key @ params["wk"] + params["bk"]
    v = value @ params["wv"] + params["bv"]
    q = q.reshape(B, Tq, num_heads, hd).transpose(0, 2, 1, 3)
    k = k.reshape(B, -1, num_heads, hd).transpose(0, 2, 1, 3)
    v = v.reshape(B, -1, num_heads, hd).transpose(0, 2, 1, 3)
    s = jnp.einsum("bhqd,bhkd->bhqk", q, k) / math.sqrt(hd)
    p = jax.nn.softmax(s, axis=-1)
    o = jnp.einsum("bhqk,bhkd->bhqd", p, v)
    o = o.transpose(0, 2, 1, 3).reshape(B, Tq, Dq)
    return o @ params["wo"] + params["bo"]


if __name__ == "__main__":
    B, T1, T2 = 2, 8, 1
    dim_q, dim_kv, num_heads = 32, 32, 4

    root = jax.random.PRNGKey(0)
    kp_, kx, ky, kz, kw = jax.random.split(root, 5)

    params = init_mha_params(kp_, dim_q, dim_kv, add_bias=True)

    # --- cross-attention style: distinct q / k / v tensors -------------------
    query = jax.random.normal(kx, (B, T1, dim_q), jnp.float32)
    key_in = jax.random.normal(ky, (B, T1, dim_kv), jnp.float32)
    value_in = jax.random.normal(kz, (B, T1, dim_kv), jnp.float32)

    ref = _ref_forward(params, num_heads, query, key_in, value_in)

    # exact-math check (f32 MXU operands)
    out_f32 = mha_with_cache_forward(params, num_heads, query, key_in, value_in,
                                     compute_dtype=jnp.float32)
    out_f32 = jax.block_until_ready(out_f32)
    assert out_f32.shape == (B, T1, dim_q)
    assert jnp.allclose(out_f32, ref, atol=2e-3, rtol=2e-3)

    # default fast path (bf16 MXU operands, f32 accumulation)
    out_bf = mha_with_cache_forward(params, num_heads, query, key_in, value_in)
    out_bf = jax.block_until_ready(out_bf)
    assert jnp.allclose(out_bf, ref, atol=5e-2, rtol=5e-2)

    # --- self-attention (fused QKV projection) with cache --------------------
    x1 = jax.random.normal(kw, (B, T1, dim_q), jnp.float32)
    out1, (ck, cv) = mha_with_cache_forward(
        params, num_heads, x1, x1, x1, use_cache=True, self_attention=True)
    jax.block_until_ready((out1, ck, cv))
    assert ck.shape == (B, num_heads, T1, dim_q // num_heads)
    ref1 = _ref_forward(params, num_heads, x1, x1, x1)
    assert jnp.allclose(out1, ref1, atol=5e-2, rtol=5e-2)

    # --- decode step: one new token, reuse the cache --------------------------
    x2 = jax.random.normal(jax.random.fold_in(root, 7), (B, T2, dim_q), jnp.float32)
    out2 = mha_with_cache_forward(
        params, num_heads, x2, x2, x2, past_key_value=(ck, cv),
        self_attention=True)
    out2 = jax.block_until_ready(out2)
    xfull = jnp.concatenate([x1, x2], axis=1)
    ref_full = _ref_forward(params, num_heads, xfull, xfull, xfull)
    assert jnp.allclose(out2, ref_full[:, T1:, :], atol=5e-2, rtol=5e-2)

    print("KERNEL_OK")
</pallas_src>

<mosaic_0001>
module attributes {stable_mosaic.version = 11 : i64} {
  func.func @_linear_kernel(%arg0: i32, %arg1: i32, %arg2: i32, %arg3: memref<16x32xf32, #tpu.memory_space<vmem>>, %arg4: memref<32x32xf32, #tpu.memory_space<vmem>>, %arg5: memref<1x32xf32, #tpu.memory_space<vmem>>, %arg6: memref<16x32xf32, #tpu.memory_space<vmem>>, %arg7: memref<16x32xf32, #tpu.memory_space<vmem>>) attributes {dimension_semantics = [#tpu.dimension_semantics<parallel>, #tpu.dimension_semantics<parallel>, #tpu.dimension_semantics<arbitrary>], iteration_bounds = array<i64: 1, 1, 1>, scalar_prefetch = 0 : i64, scratch_operands = 1 : i64, tpu.core_type = #tpu.core_type<tc>, window_params = [{transform_indices = @transform_0, window_bounds = array<i64: 16, 32>}, {transform_indices = @transform_1, window_bounds = array<i64: 32, 32>}, {transform_indices = @transform_2, window_bounds = array<i64: 1, 32>}, {transform_indices = @transform_3, window_bounds = array<i64: 16, 32>}]} {
    %c0_i32 = arith.constant 0 : i32
    %0 = arith.cmpi eq, %arg2, %c0_i32 : i32
    %1 = arith.extui %0 : i1 to i32
    %c0_i32_0 = arith.constant 0 : i32
    %2 = arith.cmpi ne, %1, %c0_i32_0 : i32
    scf.if %2 {
      %cst_10 = arith.constant 0.000000e+00 : f32
      %12 = vector.broadcast %cst_10 : f32 to vector<16x32xf32>
      %c0_11 = arith.constant 0 : index
      %c0_12 = arith.constant 0 : index
      %13 = vector.load %arg7[%c0_11, %c0_12] : memref<16x32xf32, #tpu.memory_space<vmem>>, vector<16x32xf32>
      tpu.vector_store %arg7[%c0_11, %c0_12], %12 {strides = array<i32>} : memref<16x32xf32, #tpu.memory_space<vmem>>, vector<16x32xf32>,
    } else {
    }
    %c0 = arith.constant 0 : index
    %c0_1 = arith.constant 0 : index
    %3 = vector.load %arg7[%c0, %c0_1] : memref<16x32xf32, #tpu.memory_space<vmem>>, vector<16x32xf32>
    %c0_2 = arith.constant 0 : index
    %c0_3 = arith.constant 0 : index
    %4 = vector.load %arg3[%c0_2, %c0_3] : memref<16x32xf32, #tpu.memory_space<vmem>>, vector<16x32xf32>
    %c0_4 = arith.constant 0 : index
    %c0_5 = arith.constant 0 : index
    %5 = vector.load %arg4[%c0_4, %c0_5] : memref<32x32xf32, #tpu.memory_space<vmem>>, vector<32x32xf32>
    %cst = arith.constant dense<0.000000e+00> : vector<16x32xf32>
    %6 = tpu.matmul %4, %5, %cst {dimension_numbers = #tpu.dot_dimension_numbers<[1], [0], [0], [1], [0, 0, 1, 1], [], []>} : vector<16x32xf32>, vector<32x32xf32>, vector<16x32xf32> -> vector<16x32xf32>
    %7 = arith.addf %3, %6 : vector<16x32xf32>
    %c0_6 = arith.constant 0 : index
    %c0_7 = arith.constant 0 : index
    %8 = vector.load %arg7[%c0_6, %c0_7] : memref<16x32xf32, #tpu.memory_space<vmem>>, vector<16x32xf32>
    tpu.vector_store %arg7[%c0_6, %c0_7], %7 {strides = array<i32>} : memref<16x32xf32, #tpu.memory_space<vmem>>, vector<16x32xf32>,
    %c0_i32_8 = arith.constant 0 : i32
    %9 = arith.cmpi eq, %arg2, %c0_i32_8 : i32
    %10 = arith.extui %9 : i1 to i32
    %c0_i32_9 = arith.constant 0 : i32
    %11 = arith.cmpi ne, %10, %c0_i32_9 : i32
    scf.if %11 {
      %c0_10 = arith.constant 0 : index
      %c0_11 = arith.constant 0 : index
      %12 = vector.load %arg7[%c0_10, %c0_11] : memref<16x32xf32, #tpu.memory_space<vmem>>, vector<16x32xf32>
      %c0_12 = arith.constant 0 : index
      %c0_13 = arith.constant 0 : index
      %13 = vector.load %arg5[%c0_12, %c0_13] : memref<1x32xf32, #tpu.memory_space<vmem>>, vector<1x32xf32>
      %14 = vector.broadcast %13 : vector<1x32xf32> to vector<16x32xf32>
      %15 = arith.addf %12, %14 : vector<16x32xf32>
      %c0_14 = arith.constant 0 : index
      %c0_15 = arith.constant 0 : index
      %16 = vector.load %arg6[%c0_14, %c0_15] : memref<16x32xf32, #tpu.memory_space<vmem>>, vector<16x32xf32>
      tpu.vector_store %arg6[%c0_14, %c0_15], %15 {strides = array<i32>} : memref<16x32xf32, #tpu.memory_space<vmem>>, vector<16x32xf32>,
    } else {
    }
    return
  }
  func.func @transform_0(%arg0: i32, %arg1: i32, %arg2: i32) -> (i32, i32) {
    %c0_i32 = arith.constant 0 : i32
    return %arg0, %arg2 : i32, i32
  }
  func.func @transform_1(%arg0: i32, %arg1: i32, %arg2: i32) -> (i32, i32) {
    %c0_i32 = arith.constant 0 : i32
    return %arg2, %arg1 : i32, i32
  }
  func.func @transform_2(%arg0: i32, %arg1: i32, %arg2: i32) -> (i32, i32) {
    %c0_i32 = arith.constant 0 : i32
    %c0_i32_0 = arith.constant 0 : i32
    return %c0_i32, %arg1 : i32, i32
  }
  func.func @transform_3(%arg0: i32, %arg1: i32, %arg2: i32) -> (i32, i32) {
    %c0_i32 = arith.constant 0 : i32
    return %arg0, %arg1 : i32, i32
  }
}

</mosaic_0001>

<llo_original>
// kernel: tpu_custom_call.1
$region0: #{tpu_custom_call.1}
  #allocation0 [shape = 'u32[]', space=smem, size = 0x4, offset = 0x4, fixed_abs, tag = 'smem constant byte address 0x4 - core index']
  #allocation1 [shape = 'u32[144,128]{1,0:T(1,128)}', space=vmem, size = 0x12000, scoped, tag = 'internal scratch']
  #allocation2 [shape = 'f32[16,32]{1,0:T(8,128)}', space=vmem, size = 0x2000, scoped, tag = 'scratch operand']
  %s0 = inlined_call_operand.hbm [shape: f32[16,32], index: 0, kind: input, shape index: {}]
  %s1 = inlined_call_operand.hbm [shape: f32[32,32], index: 1, kind: input, shape index: {}]
  %s2 = inlined_call_operand.vmem [shape: f32[1,32], index: 2, kind: input, shape index: {}]
  %s3 = inlined_call_operand.hbm [shape: f32[16,32], index: 3, kind: output, shape index: {}]
  %s4 = sld [smem:[#allocation0]]
  $region38: #{tpu_custom_call.1} parent=0
    _
  %s6 = ssub.s32 1, %s4
  %s7 = scalar_select 0, %s6, %s4
  $region1: #{tpu_custom_call.1} parent=0
    #allocation3 [shape = 'u8[8192]{0}', space=vmem, size = 0x2000, scoped, tag = 'input window, operand 0, single buffered']
    #allocation4 [shape = 's32[1]{0}', space=sflag, size = 0x4, scoped, tag = 'scoped memory for tpu_custom_call.1']
    #allocation5 [shape = 's32[1]{0}', space=sflag, size = 0x4, scoped, tag = 'scoped memory for tpu_custom_call.1']
    #allocation6 [shape = 'u8[16384]{0}', space=vmem, size = 0x4000, scoped, tag = 'input window, operand 1, single buffered']
    #allocation7 [shape = 's32[1]{0}', space=sflag, size = 0x4, scoped, tag = 'scoped memory for tpu_custom_call.1']
    #allocation8 [shape = 'u8[8192]{0}', space=vmem, size = 0x2000, scoped, tag = 'output window, operand 0, single buffered']
    %8 = vsyncpa [#allocation4], 0
    %9 = vsyncpa [#allocation7], 0
    %10 = vsyncpa [#allocation5], 0
    // Predicated region
    $region2: #{tpu_custom_call.1} parent=1 // pred_check
      _
    $region3: #{tpu_custom_call.1} parent=1 // pred_check_branch
      %12 = sbr.rel (0) target = $region5
    $region4: #{tpu_custom_call.1} parent=1 // pred_region
      %s14 = ssub.s32 256, 256
      %15 = vsyncadd [#allocation4], %s14
      %s16 = sshll.u32 [#allocation3], 4
      %s17 = int_to_ptr.vmem [resolvable:$true] %s16
      %22 = dma.hbm_to_vmem [thread:$0]  %s0, 256, %s17, [#allocation4], 128, 128, 8
    $region5: #{tpu_custom_call.1} parent=1 // pred_fallthru
      _
    // Predicated region
    $region6: #{tpu_custom_call.1} parent=1 // pred_check
      _
    $region7: #{tpu_custom_call.1} parent=1 // pred_check_branch
      %24 = sbr.rel (0) target = $region9
    $region8: #{tpu_custom_call.1} parent=1 // pred_region
      %s26 = ssub.s32 512, 512
      %27 = vsyncadd [#allocation7], %s26
      %s28 = sshll.u32 [#allocation6], 4
      %s29 = int_to_ptr.vmem [resolvable:$true] %s28
      %34 = dma.hbm_to_vmem [thread:$0]  %s1, 512, %s29, [#allocation7], 128, 128, 8
    $region9: #{tpu_custom_call.1} parent=1 // pred_fallthru
      _
    // Predicated region
    $region10: #{tpu_custom_call.1} parent=1 // pred_check
      _
    $region11: #{tpu_custom_call.1} parent=1 // pred_check_branch
      %36 = sbr.rel (0) target = $region13
    $region12: #{tpu_custom_call.1} parent=1 // pred_region
      _
    $region13: #{tpu_custom_call.1} parent=1 // pred_fallthru
      _
    // Predicated region
    $region14: #{tpu_custom_call.1} parent=1 // pred_check
      _
    $region15: #{tpu_custom_call.1} parent=1 // pred_check_branch
      %38 = sbr.rel (0) target = $region17
    $region16: #{tpu_custom_call.1} parent=1 // pred_region
      %39 = dma.done [#allocation4], 256
    $region17: #{tpu_custom_call.1} parent=1 // pred_fallthru
      _
    // Predicated region
    $region18: #{tpu_custom_call.1} parent=1 // pred_check
      _
    $region19: #{tpu_custom_call.1} parent=1 // pred_check_branch
      %41 = sbr.rel (0) target = $region21
    $region20: #{tpu_custom_call.1} parent=1 // pred_region
      %42 = dma.done [#allocation7], 512
    $region21: #{tpu_custom_call.1} parent=1 // pred_fallthru
      _
    %p43 = scmp.eq.s32.totalorder 0, 0
    // Predicated region
    $region22: #{tpu_custom_call.1} parent=1 // pred_check
      %p44 = pneg %p43
    $region23: #{tpu_custom_call.1} parent=1 // pred_check_branch
      %46 = sbr.rel (%p44) target = $region25
    $region24: #{tpu_custom_call.1} parent=1 // pred_region
      %vm47 = vcmask 261120
      %48 = vst.msk [vmem:[#allocation2] sm:$0xff] %vm47, 0.0
      %49 = vst.msk [vmem:[#allocation2 + $0x8] sm:$0xff] %vm47, 0.0
    $region25: #{tpu_custom_call.1} parent=1 // pred_fallthru
      _
    %v50 = vld [vmem:[#allocation2] sm:$0xff]
    %v51 = vld [vmem:[#allocation2 + $0x8] sm:$0xff]
    %v52 = vld [vmem:[#allocation3] sm:$0xff]
    %v53 = vld [vmem:[#allocation3 + $0x8] sm:$0xff]
    %v54 = vld [vmem:[#allocation6] sm:$0xff]
    %v55 = vld [vmem:[#allocation6 + $0x8] sm:$0xff]
    %v56 = vld [vmem:[#allocation6 + $0x10] sm:$0xff]
    %v57 = vld [vmem:[#allocation6 + $0x18] sm:$0xff]
    %vm58 = vcmask 261120
    %v60 = vsel %vm58, %v52, 0
    %v63 = vsel %vm58, %v53, 0
    %65 = vmatprep.subr.mxu0 0.0
    %66 = vmatpush1.msra.mxu0 %v54
    %67 = vmatprep.subr.mxu0 0.0
    %68 = vmatpush1.msra.mxu0 %v55
    %69 = vmatprep.subr.mxu0 0.0
    %70 = vmatpush1.msra.mxu0 %v56
    %71 = vmatprep.subr.mxu0 0.0
    %72 = vmatpush1.msra.mxu0 %v57
    %73 = vmatprep.subr.mxu0 0.0
    %74 = vmatpush1.msra.mxu0 0.0
    %75 = vmatprep.subr.mxu0 0.0
    %76 = vmatpush1.msra.mxu0 0.0
    %77 = vmatprep.subr.mxu0 0.0
    %78 = vmatpush1.msra.mxu0 0.0
    %79 = vmatprep.subr.mxu0 0.0
    %80 = vmatpush1.msra.mxu0 0.0
    %81 = vmatprep.subr.mxu0 0.0
    %82 = vmatpush1.msra.mxu0 0.0
    %83 = vmatprep.subr.mxu0 0.0
    %84 = vmatpush1.msra.mxu0 0.0
    %85 = vmatprep.subr.mxu0 0.0
    %86 = vmatpush1.msra.mxu0 0.0
    %87 = vmatprep.subr.mxu0 0.0
    %88 = vmatpush1.msra.mxu0 0.0
    %89 = vmatprep.subr.mxu0 0.0
    %90 = vmatpush1.msra.mxu0 0.0
    %91 = vmatprep.subr.mxu0 0.0
    %92 = vmatpush1.msra.mxu0 0.0
    %93 = vmatprep.subr.mxu0 0.0
    %94 = vmatpush1.msra.mxu0 0.0
    %95 = vmatprep.subr.mxu0 0.0
    %96 = vmatpush1.msra.mxu0 0.0
    %97 = vmatprep.subr.mxu0 0.0
    %98 = vmatpush1.msra.mxu0 0.0
    %99 = vmatprep.subr.mxu0 0.0
    %100 = vmatpush1.msra.mxu0 0.0
    %101 = vmatprep.subr.mxu0 0.0
    %102 = vmatpush1.msra.mxu0 0.0
    %103 = vmatprep.subr.mxu0 0.0
    %104 = vmatpush1.msra.mxu0 0.0
    %105 = vmatprep.subr.mxu0 0.0
    %106 = vmatpush1.msra.mxu0 0.0
    %107 = vmatprep.subr.mxu0 0.0
    %108 = vmatpush1.msra.mxu0 0.0
    %109 = vmatprep.subr.mxu0 0.0
    %110 = vmatpush1.msra.mxu0 0.0
    %111 = vmatprep.subr.mxu0 0.0
    %112 = vmatpush1.msra.mxu0 0.0
    %113 = vmatprep.subr.mxu0 0.0
    %114 = vmatpush1.msra.mxu0 0.0
    %115 = vmatprep.subr.mxu0 0.0
    %116 = vmatpush1.msra.mxu0 0.0
    %117 = vmatprep.subr.mxu0 0.0
    %118 = vmatpush1.msra.mxu0 0.0
    %119 = vmatprep.subr.mxu0 0.0
    %120 = vmatpush1.msra.mxu0 0.0
    %121 = vmatprep.subr.mxu0 0.0
    %122 = vmatpush1.msra.mxu0 0.0
    %123 = vmatprep.subr.mxu0 0.0
    %124 = vmatpush1.msra.mxu0 0.0
    %125 = vmatprep.subr.mxu0 0.0
    %126 = vmatpush1.msra.mxu0 0.0
    %127 = vmatprep.subr.mxu0 0.0
    %128 = vmatpush1.msra.mxu0 0.0
    %129 = vmatprep.mubr.f32.mxu0 0.0
    %130 = vmatmul.mubr.f32.gmra.mrb[0].mxu0 %v60
    %v131 = vpop.f32.mrb[0].mxu0
    %v132 = vadd.f32 0.0, %v131
    %v133 = vpop.f32.mrb[0].mxu0
    %134 = vmatprep.mubr.f32.mxu0 0.0
    %135 = vmatmul.mubr.f32.gmra.mrb[0].mxu0 %v63
    %v136 = vpop.f32.mrb[0].mxu0
    %v137 = vadd.f32 0.0, %v136
    %v138 = vpop.f32.mrb[0].mxu0
    %139 = vdwg.mxu0
    %v140 = vadd.f32 %v50, %v132
    %v141 = vadd.f32 %v51, %v137
    %142 = vst.msk [vmem:[#allocation2] sm:$0xff] %vm58, %v140
    %143 = vst.msk [vmem:[#allocation2 + $0x8] sm:$0xff] %vm58, %v141
    // Predicated region
    $region26: #{tpu_custom_call.1} parent=1 // pred_check
      %p144 = pneg %p43
    $region27: #{tpu_custom_call.1} parent=1 // pred_check_branch
      %146 = sbr.rel (%p144) target = $region29
    $region28: #{tpu_custom_call.1} parent=1 // pred_region
      %v147 = vld [vmem:[#allocation2] sm:$0xff]
      %v148 = vld [vmem:[#allocation2 + $0x8] sm:$0xff]
      %v149 = vld [vmem:[%s2] sm:$0x1]
      %v151 = vlaneseq
      %v152 = vshrl.u32 %v151, 7
      %v153 = vsub.s32 0, %v152
      %v154 = vrot.slane %v149, %v153
      %v156 = vadd.f32 %v147, %v154
      %v157 = vadd.f32 %v148, %v154
      %158 = vst.msk [vmem:[#allocation8] sm:$0xff] %vm58, %v156
      %159 = vst.msk [vmem:[#allocation8 + $0x8] sm:$0xff] %vm58, %v157
    $region29: #{tpu_custom_call.1} parent=1 // pred_fallthru
      _
    // Predicated region
    $region30: #{tpu_custom_call.1} parent=1 // pred_check
      _
    $region31: #{tpu_custom_call.1} parent=1 // pred_check_branch
      %161 = sbr.rel (0) target = $region33
    $region32: #{tpu_custom_call.1} parent=1 // pred_region
      %s163 = ssub.s32 256, 256
      %164 = vsyncadd [#allocation5], %s163
      %s165 = sshll.u32 [#allocation8], 4
      %s166 = int_to_ptr.vmem [resolvable:$true] %s165
      %171 = dma.vmem_to_hbm [thread:$0]  %s166, 256, %s3, [#allocation5], 128, 128, 8
    $region33: #{tpu_custom_call.1} parent=1 // pred_fallthru
      _
    // Predicated region
    $region34: #{tpu_custom_call.1} parent=1 // pred_check
      _
    $region35: #{tpu_custom_call.1} parent=1 // pred_check_branch
      %173 = sbr.rel (0) target = $region37
    $region36: #{tpu_custom_call.1} parent=1 // pred_region
      %174 = dma.done [#allocation5], 256
    $region37: #{tpu_custom_call.1} parent=1 // pred_fallthru
      _
    %175 = vsyncpa [#allocation4], 1
    %176 = vsyncpa [#allocation7], 1
    %177 = vsyncpa [#allocation5], 1

</llo_original>
